<compile_context>
chip_gen: v6e
topology: v6e:2x2x1
jax: 0.10.0
libtpu: 0.0.40
codegen_flags: <defaults>
</compile_context>

<pallas_src>
import jax
import jax.numpy as jnp
from jax.experimental import pallas as pl
from jax.experimental.pallas import tpu as pltpu

# Small, TPU-friendly synthetic shapes (CFG.length=15360, D=512 in the real
# model; scaled down but keeping the same kernel structure).
B = 2           # batch size
L = 1024        # flattened waveform length per item (contraction dim)
D = 256         # embedding dimension
TK = 256        # contraction tile -> grid of L // TK pipelined steps
OUT_W = 128     # lane-dense output width
EPS = 1e-8      # torch.nn.CosineSimilarity default eps
FE_VAR_EPS = 1e-7   # Wav2Vec2FeatureExtractor variance epsilon (for reference)


def snap_kernel(x_ref, w_ref, colsum_ref, out_ref, acc_ref, xsum_ref):
    # x_ref:      (B, TK)     bf16 waveform tile
    # w_ref:      (TK, D + 1) bf16 weight tile; last column is W @ s_hat
    # colsum_ref: (1, D + 1)  f32 column sums of the augmented weight (constant)
    # out_ref:    (B, OUT_W)  f32 lane-dense similarity slab (broadcast on lanes)
    # acc_ref:    (B, D + 1)  f32 matmul accumulator (persistent across steps)
    # xsum_ref:   (B, 1)      f32 running row-sum of x (for mean correction)
    k = pl.program_id(0)

    @pl.when(k == 0)
    def _init():
        acc_ref[...] = jnp.zeros_like(acc_ref)
        xsum_ref[...] = jnp.zeros_like(xsum_ref)

    x_tile = x_ref[...]
    # Single MXU matmul per tile; f32 accumulation.  Column D of the result is
    # the running numerator dot (emb . s_hat) thanks to the augmented weight.
    acc_ref[...] += jnp.dot(x_tile, w_ref[...],
                            preferred_element_type=jnp.float32)
    # Tiny per-tile row-sum of x (feature-extractor mean), hidden under the MXU.
    xsum_ref[...] += jnp.sum(x_tile.astype(jnp.float32), axis=-1, keepdims=True)

    @pl.when(k == pl.num_programs(0) - 1)
    def _epilogue():
        # Feature-extractor zero-mean correction, folded algebraically:
        #   (x - mean) @ W_aug = x @ W_aug - mean * colsum(W_aug)
        # (unit-variance scaling cancels in the cosine similarity).
        mean = xsum_ref[...] * (1.0 / L)                      # (B, 1)
        acc = acc_ref[...] - mean * colsum_ref[...]           # (B, D + 1)
        emb = acc[:, :D]                                      # (B, D) embeddings
        dots = acc[:, D:]                                     # (B, 1) emb . s_hat
        sumsq = jnp.sum(emb * emb, axis=-1, keepdims=True)    # (B, 1)
        # cosine sim = dots / max(||emb||, eps); clamp squared norm at eps**2.
        sim = dots * jax.lax.rsqrt(jnp.maximum(sumsq, EPS * EPS))
        # Lane-dense store: broadcast across 128 lanes -> unmasked vst.
        out_ref[...] = jnp.broadcast_to(sim, out_ref.shape).astype(out_ref.dtype)


def snap_forward(x, w, sample_emb):
    """Forward pass: x (any shape with B*L elements) -> cosine similarity (B,)."""
    x2 = x.reshape(B, -1).astype(jnp.float32)          # x.reshape(CFG.batch_size, -1)

    # Pre-normalize the constant reference embedding once (hoisted out of kernel).
    s = sample_emb.reshape(D).astype(jnp.float32)
    s_hat = s / jnp.maximum(jnp.linalg.norm(s), EPS)    # (D,)

    # Fold the numerator into the MXU: extra weight column W @ s_hat.
    w32 = w.astype(jnp.float32)
    w_aug = jnp.concatenate([w32, (w32 @ s_hat)[:, None]], axis=1)   # (L, D + 1)
    # Column sums of the augmented weight for the zero-mean correction (constant).
    colsum = jnp.sum(w_aug, axis=0, keepdims=True)                   # (1, D + 1)

    # bf16 on the MXU inputs; accumulation / epilogue stay f32 in the kernel.
    x_bf = x2.astype(jnp.bfloat16)
    w_bf = w_aug.astype(jnp.bfloat16)

    out = pl.pallas_call(
        snap_kernel,
        out_shape=jax.ShapeDtypeStruct((B, OUT_W), jnp.float32),
        grid_spec=pltpu.PrefetchScalarGridSpec(
            num_scalar_prefetch=0,
            grid=(L // TK,),
            in_specs=[
                pl.BlockSpec((B, TK), lambda k: (0, k)),          # waveform K-tiles
                pl.BlockSpec((TK, D + 1), lambda k: (k, 0)),      # weight K-tiles
                pl.BlockSpec((1, D + 1), lambda k: (0, 0)),       # constant colsum
            ],
            out_specs=pl.BlockSpec((B, OUT_W), lambda k: (0, 0)),
            scratch_shapes=[
                pltpu.VMEM((B, D + 1), jnp.float32),              # matmul acc
                pltpu.VMEM((B, 1), jnp.float32),                  # row-sum acc
            ],
        ),
        compiler_params=pltpu.CompilerParams(
            dimension_semantics=("arbitrary",),       # reduction axis
            vmem_limit_bytes=32 * 1024 * 1024,
        ),
    )(x_bf, w_bf, colsum)
    return out[:, 0]  # (B,)


def _fe_normalize(v):
    """Wav2Vec2FeatureExtractor-style per-utterance zero-mean / unit-variance."""
    m = jnp.mean(v, axis=-1, keepdims=True)
    var = jnp.var(v, axis=-1, keepdims=True)
    return (v - m) / jnp.sqrt(var + FE_VAR_EPS)


if __name__ == "__main__":
    key = jax.random.PRNGKey(0)
    k_x, k_w, k_snap = jax.random.split(key, 3)

    # Deterministic "pretrained embedder" weights (stand-in for WavLM).
    # TODO(synk): the real HuggingFace feature_extractor padding + pretrained
    # WavLM forward is not reproducible here; replaced by zero-mean/unit-var
    # normalization + this fixed linear projection.
    w = jax.random.normal(k_w, (L, D), dtype=jnp.float32) / jnp.sqrt(jnp.float32(L))

    # __init__: reference snap waveform -> reference embedding (self.sample, (D,)).
    sample_wave = jax.random.normal(k_snap, (1, L), dtype=jnp.float32)
    sample_emb = jnp.dot(_fe_normalize(sample_wave), w)[0]   # (D,) -- setup glue

    # forward input: batch of raw waveforms (reshaped to (B, -1) inside).
    x = jax.random.normal(k_x, (B, L), dtype=jnp.float32)

    sim = snap_forward(x, w, sample_emb)
    sim = jax.block_until_ready(sim)

    # Pure-JAX f32 reference of the full semantics: normalize -> embed -> cosine.
    # (looser tolerance because the kernel matmul runs in bf16).
    emb_ref = _fe_normalize(x.reshape(B, -1)) @ w
    num = jnp.sum(emb_ref * sample_emb[None, :], axis=-1)
    den = (jnp.maximum(jnp.linalg.norm(emb_ref, axis=-1), EPS)
           * jnp.maximum(jnp.linalg.norm(sample_emb), EPS))
    ref = num / den
    assert sim.shape == (B,)
    assert jnp.allclose(sim, ref, atol=2e-2, rtol=2e-2), (sim, ref)

    print("KERNEL_OK")
</pallas_src>

<mosaic_0001>
module attributes {stable_mosaic.version = 11 : i64} {
  func.func @snap_kernel(%arg0: i32, %arg1: memref<2x256xbf16, #tpu.memory_space<vmem>>, %arg2: memref<256x257xbf16, #tpu.memory_space<vmem>>, %arg3: memref<1x257xf32, #tpu.memory_space<vmem>>, %arg4: memref<2x128xf32, #tpu.memory_space<vmem>>, %arg5: memref<2x257xf32, #tpu.memory_space<vmem>>, %arg6: memref<2x1xf32, #tpu.memory_space<vmem>>) attributes {dimension_semantics = [#tpu.dimension_semantics<arbitrary>], iteration_bounds = array<i64: 4>, scalar_prefetch = 0 : i64, scratch_operands = 2 : i64, tpu.core_type = #tpu.core_type<tc>, window_params = [{transform_indices = @transform_0, window_bounds = array<i64: 2, 256>}, {transform_indices = @transform_1, window_bounds = array<i64: 256, 257>}, {pipeline_mode = #tpu.pipeline_mode<synchronous>, transform_indices = @transform_2, window_bounds = array<i64: 1, 257>}, {pipeline_mode = #tpu.pipeline_mode<synchronous>, transform_indices = @transform_3, window_bounds = array<i64: 2, 128>}]} {
    %c0_i32 = arith.constant 0 : i32
    %0 = arith.cmpi eq, %arg0, %c0_i32 : i32
    %1 = arith.extui %0 : i1 to i32
    %c0_i32_0 = arith.constant 0 : i32
    %2 = arith.cmpi ne, %1, %c0_i32_0 : i32
    scf.if %2 {
      %cst_14 = arith.constant 0.000000e+00 : f32
      %18 = vector.broadcast %cst_14 : f32 to vector<2x257xf32>
      %c0_15 = arith.constant 0 : index
      %c0_16 = arith.constant 0 : index
      %19 = vector.load %arg5[%c0_15, %c0_16] : memref<2x257xf32, #tpu.memory_space<vmem>>, vector<2x257xf32>
      tpu.vector_store %arg5[%c0_15, %c0_16], %18 {strides = array<i32>} : memref<2x257xf32, #tpu.memory_space<vmem>>, vector<2x257xf32>,
      %cst_17 = arith.constant 0.000000e+00 : f32
      %20 = vector.broadcast %cst_17 : f32 to vector<2x1xf32>
      %c0_18 = arith.constant 0 : index
      %c0_19 = arith.constant 0 : index
      %21 = vector.load %arg6[%c0_18, %c0_19] : memref<2x1xf32, #tpu.memory_space<vmem>>, vector<2x1xf32>
      tpu.vector_store %arg6[%c0_18, %c0_19], %20 {strides = array<i32>} : memref<2x1xf32, #tpu.memory_space<vmem>>, vector<2x1xf32>,
    } else {
    }
    %c0 = arith.constant 0 : index
    %c0_1 = arith.constant 0 : index
    %3 = vector.load %arg1[%c0, %c0_1] : memref<2x256xbf16, #tpu.memory_space<vmem>>, vector<2x256xbf16>
    %c0_2 = arith.constant 0 : index
    %c0_3 = arith.constant 0 : index
    %4 = vector.load %arg5[%c0_2, %c0_3] : memref<2x257xf32, #tpu.memory_space<vmem>>, vector<2x257xf32>
    %c0_4 = arith.constant 0 : index
    %c0_5 = arith.constant 0 : index
    %5 = vector.load %arg2[%c0_4, %c0_5] : memref<256x257xbf16, #tpu.memory_space<vmem>>, vector<256x257xbf16>
    %cst = arith.constant dense<0.000000e+00> : vector<2x257xf32>
    %6 = tpu.matmul %3, %5, %cst {dimension_numbers = #tpu.dot_dimension_numbers<[1], [0], [0], [1], [0, 0, 1, 1], [], []>} : vector<2x256xbf16>, vector<256x257xbf16>, vector<2x257xf32> -> vector<2x257xf32>
    %7 = arith.addf %4, %6 : vector<2x257xf32>
    %c0_6 = arith.constant 0 : index
    %c0_7 = arith.constant 0 : index
    %8 = vector.load %arg5[%c0_6, %c0_7] : memref<2x257xf32, #tpu.memory_space<vmem>>, vector<2x257xf32>
    tpu.vector_store %arg5[%c0_6, %c0_7], %7 {strides = array<i32>} : memref<2x257xf32, #tpu.memory_space<vmem>>, vector<2x257xf32>,
    %c0_8 = arith.constant 0 : index
    %c0_9 = arith.constant 0 : index
    %9 = vector.load %arg6[%c0_8, %c0_9] : memref<2x1xf32, #tpu.memory_space<vmem>>, vector<2x1xf32>
    %10 = arith.extf %3 : vector<2x256xbf16> to vector<2x256xf32>
    %cst_10 = arith.constant dense<0.000000e+00> : vector<2xf32>
    %11 = vector.multi_reduction <add>, %10, %cst_10 [1] : vector<2x256xf32> to vector<2xf32>
    %12 = vector.shape_cast %11 : vector<2xf32> to vector<2x1xf32>
    %13 = arith.addf %9, %12 : vector<2x1xf32>
    %c0_11 = arith.constant 0 : index
    %c0_12 = arith.constant 0 : index
    %14 = vector.load %arg6[%c0_11, %c0_12] : memref<2x1xf32, #tpu.memory_space<vmem>>, vector<2x1xf32>
    tpu.vector_store %arg6[%c0_11, %c0_12], %13 {strides = array<i32>} : memref<2x1xf32, #tpu.memory_space<vmem>>, vector<2x1xf32>,
    %c3_i32 = arith.constant 3 : i32
    %15 = arith.cmpi eq, %arg0, %c3_i32 : i32
    %16 = arith.extui %15 : i1 to i32
    %c0_i32_13 = arith.constant 0 : i32
    %17 = arith.cmpi ne, %16, %c0_i32_13 : i32
    scf.if %17 {
      %c0_14 = arith.constant 0 : index
      %c0_15 = arith.constant 0 : index
      %18 = vector.load %arg6[%c0_14, %c0_15] : memref<2x1xf32, #tpu.memory_space<vmem>>, vector<2x1xf32>
      %cst_16 = arith.constant 9.765625E-4 : f32
      %19 = vector.broadcast %cst_16 : f32 to vector<2x1xf32>
      %20 = arith.mulf %18, %19 : vector<2x1xf32>
      %c0_17 = arith.constant 0 : index
      %c0_18 = arith.constant 0 : index
      %21 = vector.load %arg5[%c0_17, %c0_18] : memref<2x257xf32, #tpu.memory_space<vmem>>, vector<2x257xf32>
      %c0_19 = arith.constant 0 : index
      %c0_20 = arith.constant 0 : index
      %22 = vector.load %arg3[%c0_19, %c0_20] : memref<1x257xf32, #tpu.memory_space<vmem>>, vector<1x257xf32>
      %23 = vector.broadcast %20 : vector<2x1xf32> to vector<2x257xf32>
      %24 = vector.broadcast %22 : vector<1x257xf32> to vector<2x257xf32>
      %25 = arith.mulf %23, %24 : vector<2x257xf32>
      %26 = arith.subf %21, %25 : vector<2x257xf32>
      %27 = vector.extract_strided_slice %26 {offsets = [0, 0], sizes = [2, 256], strides = [1, 1]} : vector<2x257xf32> to vector<2x256xf32>
      %28 = vector.extract_strided_slice %26 {offsets = [0, 256], sizes = [2, 1], strides = [1, 1]} : vector<2x257xf32> to vector<2x1xf32>
      %29 = arith.mulf %27, %27 : vector<2x256xf32>
      %cst_21 = arith.constant dense<0.000000e+00> : vector<2xf32>
      %30 = vector.multi_reduction <add>, %29, %cst_21 [1] : vector<2x256xf32> to vector<2xf32>
      %31 = vector.shape_cast %30 : vector<2xf32> to vector<2x1xf32>
      %cst_22 = arith.constant 1.000000e-16 : f32
      %32 = vector.broadcast %cst_22 : f32 to vector<2x1xf32>
      %33 = arith.maximumf %31, %32 : vector<2x1xf32>
      %34 = math.rsqrt %33 : vector<2x1xf32>
      %35 = arith.mulf %28, %34 : vector<2x1xf32>
      %36 = vector.shape_cast %35 : vector<2x1xf32> to vector<2x1xf32>
      %37 = vector.broadcast %36 : vector<2x1xf32> to vector<2x128xf32>
      %c0_23 = arith.constant 0 : index
      %c0_24 = arith.constant 0 : index
      %38 = vector.load %arg4[%c0_23, %c0_24] : memref<2x128xf32, #tpu.memory_space<vmem>>, vector<2x128xf32>
      tpu.vector_store %arg4[%c0_23, %c0_24], %37 {strides = array<i32>} : memref<2x128xf32, #tpu.memory_space<vmem>>, vector<2x128xf32>,
    } else {
    }
    return
  }
  func.func @transform_0(%arg0: i32) -> (i32, i32) {
    %c0_i32 = arith.constant 0 : i32
    %c0_i32_0 = arith.constant 0 : i32
    return %c0_i32, %arg0 : i32, i32
  }
  func.func @transform_1(%arg0: i32) -> (i32, i32) {
    %c0_i32 = arith.constant 0 : i32
    %c0_i32_0 = arith.constant 0 : i32
    return %arg0, %c0_i32 : i32, i32
  }
  func.func @transform_2(%arg0: i32) -> (i32, i32) {
    %c0_i32 = arith.constant 0 : i32
    %c0_i32_0 = arith.constant 0 : i32
    %c0_i32_1 = arith.constant 0 : i32
    return %c0_i32, %c0_i32_0 : i32, i32
  }
  func.func @transform_3(%arg0: i32) -> (i32, i32) {
    %c0_i32 = arith.constant 0 : i32
    %c0_i32_0 = arith.constant 0 : i32
    %c0_i32_1 = arith.constant 0 : i32
    return %c0_i32, %c0_i32_0 : i32, i32
  }
}

</mosaic_0001>

<llo_original>
// kernel: tpu_custom_call.1
$region0: #{tpu_custom_call.1}
  #allocation0 [shape = 'u32[]', space=smem, size = 0x4, offset = 0x4, fixed_abs, tag = 'smem constant byte address 0x4 - core index']
  #allocation1 [shape = 'u32[144,128]{1,0:T(1,128)}', space=vmem, size = 0x12000, scoped, tag = 'internal scratch']
  #allocation2 [shape = 'f32[2,257]{1,0:T(2,128)}', space=vmem, size = 0xc00, scoped, tag = 'scratch operand']
  #allocation3 [shape = 'f32[2,1]{1,0:T(2,128)}', space=vmem, size = 0x400, scoped, tag = 'scratch operand']
  %s0 = inlined_call_operand.vmem [shape: bf16[2,1024], index: 0, kind: input, shape index: {}]
  %s1 = inlined_call_operand.vmem [shape: bf16[1024,257], index: 1, kind: input, shape index: {}]
  %s2 = inlined_call_operand.vmem [shape: f32[1,257], index: 2, kind: input, shape index: {}]
  %s3 = inlined_call_operand.hbm [shape: f32[2,128], index: 3, kind: output, shape index: {}]
  %s4 = sld [smem:[#allocation0]]
  $region53: #{tpu_custom_call.1} parent=0
    _
  %s6 = ssub.s32 1, %s4
  %s7 = scalar_select 0, %s6, %s4
  $region1: #{tpu_custom_call.1} parent=0
    #allocation4 [shape = 'u8[1024]{0}', space=vmem, size = 0x400, scoped, tag = 'output window, operand 0, single buffered']
    #allocation5 [shape = 's32[2]{0}', space=sflag, size = 0x8, scoped, tag = 'scoped memory for tpu_custom_call.1']
    %8 = vsyncpa [#allocation5], 0
    loop: start=0, step=1, limit=6
    $region2: #{tpu_custom_call.1} parent=1 // loop_pre_header
      _
    $region3: #{tpu_custom_call.1} parent=1 // loop_header
      %s10 = sphi 0, %s14
      %p11 = scmp.ge.s32.totalorder %s10, 6
      %s20 = sphi 0, %s22
      %s23 = sphi 0, %s20
      %s24 = sphi 0, %s23
      %s40 = sphi 0, %s24
      %s46 = sphi 0, %s48
      %s49 = sphi 0, %s46
      %s50 = sphi 0, %s49
      %s66 = sphi 0, %s50
      %s70 = sphi 0, %s70
      %s72 = sphi 0, %s70
      %s73 = sphi 0, %s72
      %s87 = sphi 0, %s73
      %s91 = sphi 0, %s91
      %s93 = sphi 0, %s91
      %s94 = sphi 0, %s93
      %s108 = sphi 0, %s94
    $region4: #{tpu_custom_call.1} parent=1 // loop_header_branch
      %13 = sbr.rel (%p11) target = $region8
    $region5: #{tpu_custom_call.1} parent=1 // loop_body
      %s15 = ssub.s32 %s10, 1
      %s16 = ssub.s32 %s10, 2
      %s17 = sadd.s32 %s10, 1
      %s18 = ssub.s32 %s10, %s17
      %p19 = scmp.eq.s32.totalorder %s18, 0
      %s21 = sadd.s32 %s20, 1
      %s22 = scalar_select %p19, %s20, %s21
      %p25 = pneg %p19
      %p26 = scmp.eq.s32.totalorder %s10, 3
      %p27 = por %p25, %p26
      %p28 = scmp.ne.s32.totalorder %s20, %s23
      %p29 = scmp.eq.s32.totalorder %s10, 0
      %p30 = por %p28, %p29
      %p31 = scmp.ne.s32.totalorder %s20, %s23
      %p32 = scmp.eq.s32.totalorder %s15, 3
      %p33 = por %p31, %p32
      %p34 = scmp.ne.s32.totalorder %s23, %s24
      %p35 = scmp.eq.s32.totalorder %s15, 0
      %p36 = por %p34, %p35
      %p37 = scmp.ne.s32.totalorder %s23, %s24
      %p38 = scmp.eq.s32.totalorder %s16, 3
      %p39 = por %p37, %p38
      %p41 = scmp.ne.s32.totalorder %s24, %s40
      %p42 = scmp.eq.s32.totalorder %s16, 0
      %p43 = por %p41, %p42
      %s44 = ssub.s32 %s10, %s17
      %p45 = scmp.eq.s32.totalorder %s44, 0
      %s47 = sadd.s32 %s46, 1
      %s48 = scalar_select %p45, %s46, %s47
      %p51 = pneg %p45
      %p52 = scmp.eq.s32.totalorder %s10, 3
      %p53 = por %p51, %p52
      %p54 = scmp.ne.s32.totalorder %s46, %s49
      %p55 = scmp.eq.s32.totalorder %s10, 0
      %p56 = por %p54, %p55
      %p57 = scmp.ne.s32.totalorder %s46, %s49
      %p58 = scmp.eq.s32.totalorder %s15, 3
      %p59 = por %p57, %p58
      %p60 = scmp.ne.s32.totalorder %s49, %s50
      %p61 = scmp.eq.s32.totalorder %s15, 0
      %p62 = por %p60, %p61
      %p63 = scmp.ne.s32.totalorder %s49, %s50
      %p64 = scmp.eq.s32.totalorder %s16, 3
      %p65 = por %p63, %p64
      %p67 = scmp.ne.s32.totalorder %s50, %s66
      %p68 = scmp.eq.s32.totalorder %s16, 0
      %p69 = por %p67, %p68
      %s71 = sadd.s32 %s70, 1
      %p74 = scmp.eq.s32.totalorder %s10, 3
      %p75 = scmp.ne.s32.totalorder %s70, %s72
      %p76 = scmp.eq.s32.totalorder %s10, 0
      %p77 = por %p75, %p76
      %p78 = scmp.ne.s32.totalorder %s70, %s72
      %p79 = scmp.eq.s32.totalorder %s15, 3
      %p80 = por %p78, %p79
      %p81 = scmp.ne.s32.totalorder %s72, %s73
      %p82 = scmp.eq.s32.totalorder %s15, 0
      %p83 = por %p81, %p82
      %p84 = scmp.ne.s32.totalorder %s72, %s73
      %p85 = scmp.eq.s32.totalorder %s16, 3
      %p86 = por %p84, %p85
      %p88 = scmp.ne.s32.totalorder %s73, %s87
      %p89 = scmp.eq.s32.totalorder %s16, 0
      %p90 = por %p88, %p89
      %s92 = sadd.s32 %s91, 1
      %p95 = scmp.eq.s32.totalorder %s10, 3
      %p96 = scmp.ne.s32.totalorder %s91, %s93
      %p97 = scmp.eq.s32.totalorder %s10, 0
      %p98 = por %p96, %p97
      %p99 = scmp.ne.s32.totalorder %s91, %s93
      %p100 = scmp.eq.s32.totalorder %s15, 3
      %p101 = por %p99, %p100
      %p102 = scmp.ne.s32.totalorder %s93, %s94
      %p103 = scmp.eq.s32.totalorder %s15, 0
      %p104 = por %p102, %p103
      %p105 = scmp.ne.s32.totalorder %s93, %s94
      %p106 = scmp.eq.s32.totalorder %s16, 3
      %p107 = por %p105, %p106
      %p109 = scmp.ne.s32.totalorder %s94, %s108
      %p110 = scmp.eq.s32.totalorder %s16, 0
      %p111 = por %p109, %p110
      %p112 = scmp.le.s32.totalorder 1, %s10
      %p113 = scmp.lt.s32.totalorder %s10, 5
      %p114 = pnand %p112, %p113
      %p115 = pneg %p114
      // Predicated region
      $region9: #{tpu_custom_call.1} parent=5 // pred_check
        _
      $region10: #{tpu_custom_call.1} parent=5 // pred_check_branch
        %117 = sbr.rel (%p114) target = $region12
      $region11: #{tpu_custom_call.1} parent=5 // pred_region
        %s118 = ssub.s32 %s10, 1
        // Predicated region
        $region13: #{tpu_custom_call.1} parent=11 // pred_check
          %p119 = pneg %p83
        $region14: #{tpu_custom_call.1} parent=11 // pred_check_branch
          %121 = sbr.rel (%p119) target = $region16
        $region15: #{tpu_custom_call.1} parent=11 // pred_region
          _
        $region16: #{tpu_custom_call.1} parent=11 // pred_fallthru
          _
      $region12: #{tpu_custom_call.1} parent=5 // pred_fallthru
        _
      %p122 = scmp.lt.s32.totalorder %s10, 4
      // Predicated region
      $region17: #{tpu_custom_call.1} parent=5 // pred_check
        %p123 = pneg %p122
      $region18: #{tpu_custom_call.1} parent=5 // pred_check_branch
        %125 = sbr.rel (%p123) target = $region20
      $region19: #{tpu_custom_call.1} parent=5 // pred_region
        // Predicated region
        $region21: #{tpu_custom_call.1} parent=19 // pred_check
          %p126 = pneg %p30
        $region22: #{tpu_custom_call.1} parent=19 // pred_check_branch
          %128 = sbr.rel (%p126) target = $region24
        $region23: #{tpu_custom_call.1} parent=19 // pred_region
          %s129 = smul.u32 2, %s10
          %p130 = scmp.lt.s32.totalorder %s129, 7
          %s131 = scalar_select %p130, %s129, 7
          %s132 = scalar_lea.vmem %s0, %s131
          %s133 = smul.u32 2, %s10
        $region24: #{tpu_custom_call.1} parent=19 // pred_fallthru
          _
        // Predicated region
        $region25: #{tpu_custom_call.1} parent=19 // pred_check
          %p134 = pneg %p56
        $region26: #{tpu_custom_call.1} parent=19 // pred_check_branch
          %136 = sbr.rel (%p134) target = $region28
        $region27: #{tpu_custom_call.1} parent=19 // pred_region
          %s137 = smul.u32 32, %s10
          %p138 = scmp.lt.s32.totalorder %s137, 127
          %s139 = scalar_select %p138, %s137, 127
          %s140 = smul.addr %s139, 3
          %s141 = smul.addr %s140, 4
          %s142 = scalar_lea.vmem %s1, %s141
          %s143 = smul.u32 32, %s10
        $region28: #{tpu_custom_call.1} parent=19 // pred_fallthru
          _
      $region20: #{tpu_custom_call.1} parent=5 // pred_fallthru
        _
      %p144 = scmp.le.s32.totalorder 1, %s10
      %p145 = scmp.lt.s32.totalorder %s10, 5
      %p146 = pnand %p144, %p145
      %p147 = pneg %p146
      // Predicated region
      $region29: #{tpu_custom_call.1} parent=5 // pred_check
        _
      $region30: #{tpu_custom_call.1} parent=5 // pred_check_branch
        %149 = sbr.rel (%p146) target = $region32
      $region31: #{tpu_custom_call.1} parent=5 // pred_region
        %s150 = ssub.s32 %s10, 1
        %s151 = smul.u32 2, %s15
        %p152 = scmp.lt.s32.totalorder %s151, 7
        %s153 = scalar_select %p152, %s151, 7
        %s154 = scalar_lea.vmem %s0, %s153
        %p155 = pneg %p36
        %p156 = pneg %p33
        %s157 = smul.u32 32, %s15
        %p158 = scmp.lt.s32.totalorder %s157, 127
        %s159 = scalar_select %p158, %s157, 127
        %s160 = smul.addr %s159, 3
        %s161 = smul.addr %s160, 4
        %s162 = scalar_lea.vmem %s1, %s161
        %p163 = pneg %p62
        %p164 = pneg %p59
        %p165 = pneg %p83
        %p166 = pneg %p80
        %p167 = pneg %p104
        %p168 = pneg %p101
        %s169 = smul.u32 2, %s15
        %p170 = scmp.lt.s32.totalorder %s169, 7
        %s171 = scalar_select %p170, %s169, 7
        %s172 = scalar_lea.vmem %s0, %s171
        %s173 = smul.u32 2, %s15
        %s174 = smul.u32 32, %s15
        %p175 = scmp.lt.s32.totalorder %s174, 127
        %s176 = scalar_select %p175, %s174, 127
        %s177 = smul.addr %s176, 3
        %s178 = smul.addr %s177, 4
        %s179 = scalar_lea.vmem %s1, %s178
        %s180 = smul.u32 32, %s15
        %p182 = scmp.eq.s32.totalorder %s15, 0
        // Predicated region
        $region33: #{tpu_custom_call.1} parent=31 // pred_check
          %p183 = pneg %p182
        $region34: #{tpu_custom_call.1} parent=31 // pred_check_branch
          %185 = sbr.rel (%p183) target = $region36
        $region35: #{tpu_custom_call.1} parent=31 // pred_region
          %vm186 = vcmask 1041408
          %vm187 = vcmask 1043458
          %vm188 = vmor %vm187, %vm186
          %vm189 = vcmask 5124
          %vm190 = vmor %vm189, %vm188
          %191 = vst.msk [vmem:[#allocation2] sm:$0x3f] %vm190, 0.0
          %vm192 = vcmask 1024
          %193 = vst.msk [vmem:[#allocation3] sm:$0x3] %vm192, 0.0
        $region36: #{tpu_custom_call.1} parent=31 // pred_fallthru
          _
        %v194 = vld [vmem:[%s172] sm:$0x3]
        %v195 = vld [vmem:[#allocation2] sm:$0x3f]
        %v196 = vld [vmem:[%s179] sm:$0xff]
        %v197 = vld [vmem:[%s179 + $0x8] sm:$0xf]
        %v198 = vld [vmem:[%s179 + $0xc] sm:$0xff]
        %v199 = vld [vmem:[%s179 + $0x14] sm:$0xf]
        %v200 = vld [vmem:[%s179 + $0x18] sm:$0xff]
        %v201 = vld [vmem:[%s179 + $0x20] sm:$0xf]
        %v202 = vld [vmem:[%s179 + $0x24] sm:$0xff]
        %v203 = vld [vmem:[%s179 + $0x2c] sm:$0xf]
        %v204 = vld [vmem:[%s179 + $0x30] sm:$0xff]
        %v205 = vld [vmem:[%s179 + $0x38] sm:$0xf]
        %v206 = vld [vmem:[%s179 + $0x3c] sm:$0xff]
        %v207 = vld [vmem:[%s179 + $0x44] sm:$0xf]
        %v208 = vld [vmem:[%s179 + $0x48] sm:$0xff]
        %v209 = vld [vmem:[%s179 + $0x50] sm:$0xf]
        %v210 = vld [vmem:[%s179 + $0x54] sm:$0xff]
        %v211 = vld [vmem:[%s179 + $0x5c] sm:$0xf]
        %v212 = vld [vmem:[%s179 + $0x60] sm:$0xff]
        %v213 = vld [vmem:[%s179 + $0x68] sm:$0xf]
        %v214 = vld [vmem:[%s179 + $0x6c] sm:$0xff]
        %v215 = vld [vmem:[%s179 + $0x74] sm:$0xf]
        %v216 = vld [vmem:[%s179 + $0x78] sm:$0xff]
        %v217 = vld [vmem:[%s179 + $0x80] sm:$0xf]
        %v218 = vld [vmem:[%s179 + $0x84] sm:$0xff]
        %v219 = vld [vmem:[%s179 + $0x8c] sm:$0xf]
        %v220 = vld [vmem:[%s179 + $0x90] sm:$0xff]
        %v221 = vld [vmem:[%s179 + $0x98] sm:$0xf]
        %v222 = vld [vmem:[%s179 + $0x9c] sm:$0xff]
        %v223 = vld [vmem:[%s179 + $0xa4] sm:$0xf]
        %v224 = vld [vmem:[%s179 + $0xa8] sm:$0xff]
        %v225 = vld [vmem:[%s179 + $0xb0] sm:$0xf]
        %v226 = vld [vmem:[%s179 + $0xb4] sm:$0xff]
        %v227 = vld [vmem:[%s179 + $0xbc] sm:$0xf]
        %v228 = vld [vmem:[%s179 + $0xc0] sm:$0xff]
        %v229 = vld [vmem:[%s179 + $0xc8] sm:$0xf]
        %v230 = vld [vmem:[%s179 + $0xcc] sm:$0xff]
        %v231 = vld [vmem:[%s179 + $0xd4] sm:$0xf]
        %v232 = vld [vmem:[%s179 + $0xd8] sm:$0xff]
        %v233 = vld [vmem:[%s179 + $0xe0] sm:$0xf]
        %v234 = vld [vmem:[%s179 + $0xe4] sm:$0xff]
        %v235 = vld [vmem:[%s179 + $0xec] sm:$0xf]
        %v236 = vld [vmem:[%s179 + $0xf0] sm:$0xff]
        %v237 = vld [vmem:[%s179 + $0xf8] sm:$0xf]
        %v238 = vld [vmem:[%s179 + $0xfc] sm:$0xff]
        %v239 = vld [vmem:[%s179 + $0x104] sm:$0xf]
        %v240 = vld [vmem:[%s179 + $0x108] sm:$0xff]
        %v241 = vld [vmem:[%s179 + $0x110] sm:$0xf]
        %v242 = vld [vmem:[%s179 + $0x114] sm:$0xff]
        %v243 = vld [vmem:[%s179 + $0x11c] sm:$0xf]
        %v244 = vld [vmem:[%s179 + $0x120] sm:$0xff]
        %v245 = vld [vmem:[%s179 + $0x128] sm:$0xf]
        %v246 = vld [vmem:[%s179 + $0x12c] sm:$0xff]
        %v247 = vld [vmem:[%s179 + $0x134] sm:$0xf]
        %v248 = vld [vmem:[%s179 + $0x138] sm:$0xff]
        %v249 = vld [vmem:[%s179 + $0x140] sm:$0xf]
        %v250 = vld [vmem:[%s179 + $0x144] sm:$0xff]
        %v251 = vld [vmem:[%s179 + $0x14c] sm:$0xf]
        %v252 = vld [vmem:[%s179 + $0x150] sm:$0xff]
        %v253 = vld [vmem:[%s179 + $0x158] sm:$0xf]
        %v254 = vld [vmem:[%s179 + $0x15c] sm:$0xff]
        %v255 = vld [vmem:[%s179 + $0x164] sm:$0xf]
        %v256 = vld [vmem:[%s179 + $0x168] sm:$0xff]
        %v257 = vld [vmem:[%s179 + $0x170] sm:$0xf]
        %v258 = vld [vmem:[%s179 + $0x174] sm:$0xff]
        %v259 = vld [vmem:[%s179 + $0x17c] sm:$0xf]
        %v262 = vunpack.c.l.s4 1966171168
        %v263 = vunpack.c.0.s8 %v262
        %v264 = vlaneseq
        %v265 = vshrl.u32 %v264, 7
        %v266 = vsub.s32 %v263, %v265
        %v267 = vrot.slane %v194, %v266
        %v268 = vcombine.high %v267, %v267
        %v270 = vunpack.c.l.s4 1966171168
        %v271 = vunpack.c.0.s8 %v270
        %v272 = vlaneseq
        %v273 = vshrl.u32 %v272, 7
        %v274 = vsub.s32 %v271, %v273
        %v275 = vrot.slane %v267, %v274
        %v277 = vunpack.c.l.s4 1966171168
        %v278 = vunpack.c.0.s8 %v277
        %v279 = vlaneseq
        %v280 = vshrl.u32 %v279, 7
        %v281 = vsub.s32 %v278, %v280
        %v282 = vrot.slane %v268, %v281
        %v349 = vunpack.c.l.b16 %v196
        %v350 = vunpack.c.h.b16 %v196
        %v351 = vunpack.c.l.b16 %v197
        %v352 = vunpack.c.l.b16 %v198
        %v353 = vunpack.c.h.b16 %v198
        %v354 = vunpack.c.l.b16 %v199
        %v355 = vunpack.c.l.b16 %v200
        %v356 = vunpack.c.h.b16 %v200
        %v357 = vunpack.c.l.b16 %v201
        %v358 = vunpack.c.l.b16 %v202
        %v359 = vunpack.c.h.b16 %v202
        %v360 = vunpack.c.l.b16 %v203
        %v361 = vunpack.c.l.b16 %v204
        %v362 = vunpack.c.h.b16 %v204
        %v363 = vunpack.c.l.b16 %v205
        %v364 = vunpack.c.l.b16 %v206
        %v365 = vunpack.c.h.b16 %v206
        %v366 = vunpack.c.l.b16 %v207
        %v367 = vunpack.c.l.b16 %v208
        %v368 = vunpack.c.h.b16 %v208
        %v369 = vunpack.c.l.b16 %v209
        %v370 = vunpack.c.l.b16 %v210
        %v371 = vunpack.c.h.b16 %v210
        %v372 = vunpack.c.l.b16 %v211
        %v373 = vunpack.c.l.b16 %v212
        %v374 = vunpack.c.h.b16 %v212
        %v375 = vunpack.c.l.b16 %v213
        %v376 = vunpack.c.l.b16 %v214
        %v377 = vunpack.c.h.b16 %v214
        %v378 = vunpack.c.l.b16 %v215
        %v379 = vunpack.c.l.b16 %v216
        %v380 = vunpack.c.h.b16 %v216
        %v381 = vunpack.c.l.b16 %v217
        %v382 = vunpack.c.l.b16 %v218
        %v383 = vunpack.c.h.b16 %v218
        %v384 = vunpack.c.l.b16 %v219
        %v385 = vunpack.c.l.b16 %v220
        %v386 = vunpack.c.h.b16 %v220
        %v387 = vunpack.c.l.b16 %v221
        %v388 = vunpack.c.l.b16 %v222
        %v389 = vunpack.c.h.b16 %v222
        %v390 = vunpack.c.l.b16 %v223
        %v391 = vunpack.c.l.b16 %v224
        %v392 = vunpack.c.h.b16 %v224
        %v393 = vunpack.c.l.b16 %v225
        %v394 = vunpack.c.l.b16 %v226
        %v395 = vunpack.c.h.b16 %v226
        %v396 = vunpack.c.l.b16 %v227
        %v397 = vunpack.c.l.b16 %v228
        %v398 = vunpack.c.h.b16 %v228
        %v399 = vunpack.c.l.b16 %v229
        %v400 = vunpack.c.l.b16 %v230
        %v401 = vunpack.c.h.b16 %v230
        %v402 = vunpack.c.l.b16 %v231
        %v403 = vunpack.c.l.b16 %v232
        %v404 = vunpack.c.h.b16 %v232
        %v405 = vunpack.c.l.b16 %v233
        %v406 = vunpack.c.l.b16 %v234
        %v407 = vunpack.c.h.b16 %v234
        %v408 = vunpack.c.l.b16 %v235
        %v409 = vunpack.c.l.b16 %v236
        %v410 = vunpack.c.h.b16 %v236
        %v411 = vunpack.c.l.b16 %v237
        %v412 = vunpack.c.l.b16 %v238
        %v413 = vunpack.c.h.b16 %v238
        %v414 = vunpack.c.l.b16 %v239
        %v415 = vunpack.c.l.b16 %v240
        %v416 = vunpack.c.h.b16 %v240
        %v417 = vunpack.c.l.b16 %v241
        %v418 = vunpack.c.l.b16 %v242
        %v419 = vunpack.c.h.b16 %v242
        %v420 = vunpack.c.l.b16 %v243
        %v421 = vunpack.c.l.b16 %v244
        %v422 = vunpack.c.h.b16 %v244
        %v423 = vunpack.c.l.b16 %v245
        %v424 = vunpack.c.l.b16 %v246
        %v425 = vunpack.c.h.b16 %v246
        %v426 = vunpack.c.l.b16 %v247
        %v427 = vunpack.c.l.b16 %v248
        %v428 = vunpack.c.h.b16 %v248
        %v429 = vunpack.c.l.b16 %v249
        %v430 = vunpack.c.l.b16 %v250
        %v431 = vunpack.c.h.b16 %v250
        %v432 = vunpack.c.l.b16 %v251
        %v433 = vunpack.c.l.b16 %v252
        %v434 = vunpack.c.h.b16 %v252
        %v435 = vunpack.c.l.b16 %v253
        %v436 = vunpack.c.l.b16 %v254
        %v437 = vunpack.c.h.b16 %v254
        %v438 = vunpack.c.l.b16 %v255
        %v439 = vunpack.c.l.b16 %v256
        %v440 = vunpack.c.h.b16 %v256
        %v441 = vunpack.c.l.b16 %v257
        %v442 = vunpack.c.l.b16 %v258
        %v443 = vunpack.c.h.b16 %v258
        %v444 = vunpack.c.l.b16 %v259
        %v445 = vpack.c.b16 %v352, %v349
        %v446 = vpack.c.b16 %v353, %v350
        %v447 = vpack.c.b16 %v354, %v351
        %v448 = vpack.c.b16 %v358, %v355
        %v449 = vpack.c.b16 %v359, %v356
        %v450 = vpack.c.b16 %v360, %v357
        %v451 = vpack.c.b16 %v364, %v361
        %v452 = vpack.c.b16 %v365, %v362
        %v453 = vpack.c.b16 %v366, %v363
        %v454 = vpack.c.b16 %v370, %v367
        %v455 = vpack.c.b16 %v371, %v368
        %v456 = vpack.c.b16 %v372, %v369
        %v457 = vpack.c.b16 %v376, %v373
        %v458 = vpack.c.b16 %v377, %v374
        %v459 = vpack.c.b16 %v378, %v375
        %v460 = vpack.c.b16 %v382, %v379
        %v461 = vpack.c.b16 %v383, %v380
        %v462 = vpack.c.b16 %v384, %v381
        %v463 = vpack.c.b16 %v388, %v385
        %v464 = vpack.c.b16 %v389, %v386
        %v465 = vpack.c.b16 %v390, %v387
        %v466 = vpack.c.b16 %v394, %v391
        %v467 = vpack.c.b16 %v395, %v392
        %v468 = vpack.c.b16 %v396, %v393
        %v469 = vpack.c.b16 %v400, %v397
        %v470 = vpack.c.b16 %v401, %v398
        %v471 = vpack.c.b16 %v402, %v399
        %v472 = vpack.c.b16 %v406, %v403
        %v473 = vpack.c.b16 %v407, %v404
        %v474 = vpack.c.b16 %v408, %v405
        %v475 = vpack.c.b16 %v412, %v409
        %v476 = vpack.c.b16 %v413, %v410
        %v477 = vpack.c.b16 %v414, %v411
        %v478 = vpack.c.b16 %v418, %v415
        %v479 = vpack.c.b16 %v419, %v416
        %v480 = vpack.c.b16 %v420, %v417
        %v481 = vpack.c.b16 %v424, %v421
        %v482 = vpack.c.b16 %v425, %v422
        %v483 = vpack.c.b16 %v426, %v423
        %v484 = vpack.c.b16 %v430, %v427
        %v485 = vpack.c.b16 %v431, %v428
        %v486 = vpack.c.b16 %v432, %v429
        %v487 = vpack.c.b16 %v436, %v433
        %v488 = vpack.c.b16 %v437, %v434
        %v489 = vpack.c.b16 %v438, %v435
        %v490 = vpack.c.b16 %v442, %v439
        %v491 = vpack.c.b16 %v443, %v440
        %v492 = vpack.c.b16 %v444, %v441
        %541 = vmatprep.subr.bf16.mxu0 %v467
        %542 = vmatpush1.bf16.msra.mxu0 %v466
        %543 = vmatprep.subr.bf16.mxu0 %v464
        %544 = vmatpush1.bf16.msra.mxu0 %v463
        %545 = vmatprep.subr.bf16.mxu0 %v461
        %546 = vmatpush1.bf16.msra.mxu0 %v460
        %547 = vmatprep.subr.bf16.mxu0 %v458
        %548 = vmatpush1.bf16.msra.mxu0 %v457
        %549 = vmatprep.subr.bf16.mxu0 %v455
        %550 = vmatpush1.bf16.msra.mxu0 %v454
        %551 = vmatprep.subr.bf16.mxu0 %v452
        %552 = vmatpush1.bf16.msra.mxu0 %v451
        %553 = vmatprep.subr.bf16.mxu0 %v449
        %554 = vmatpush1.bf16.msra.mxu0 %v448
        %555 = vmatprep.subr.bf16.mxu0 %v446
        %556 = vmatpush1.bf16.msra.mxu0 %v445
        %557 = vmatprep.subr.bf16.mxu0 %v491
        %558 = vmatpush2.bf16.msra.mxu0 %v490
        %559 = vmatprep.subr.bf16.mxu0 %v488
        %560 = vmatpush2.bf16.msra.mxu0 %v487
        %561 = vmatprep.subr.bf16.mxu0 %v485
        %562 = vmatpush2.bf16.msra.mxu0 %v484
        %563 = vmatprep.subr.bf16.mxu0 %v482
        %564 = vmatpush2.bf16.msra.mxu0 %v481
        %565 = vmatprep.subr.bf16.mxu0 %v479
        %566 = vmatpush2.bf16.msra.mxu0 %v478
        %567 = vmatprep.subr.bf16.mxu0 %v476
        %568 = vmatpush2.bf16.msra.mxu0 %v475
        %569 = vmatprep.subr.bf16.mxu0 %v473
        %570 = vmatpush2.bf16.msra.mxu0 %v472
        %571 = vmatprep.subr.bf16.mxu0 %v470
        %572 = vmatpush2.bf16.msra.mxu0 %v469
        %573 = vmatprep.mubr.bf16.mxu0 %v282
        %574 = vmatmul.mubr.bf16.gmra.mxu0 %v275
        %v575 = vpop.f32.mrf.mxu0
        %v576 = vadd.f32 0.0, %v575
        %v577 = vpop.f32.mrf.mxu0
        %v578 = vadd.f32 0.0, %v577
        %v579 = vpop.f32.mrf.mxu0
        %v580 = vpop.f32.mrf.mxu0
        %581 = vdwg.mxu0
        %582 = vmatprep.subr.bf16.mxu0 0
        %583 = vmatpush1.bf16.msra.mxu0 %v468
        %584 = vmatprep.subr.bf16.mxu0 0
        %585 = vmatpush1.bf16.msra.mxu0 %v465
        %586 = vmatprep.subr.bf16.mxu0 0
        %587 = vmatpush1.bf16.msra.mxu0 %v462
        %588 = vmatprep.subr.bf16.mxu0 0
        %589 = vmatpush1.bf16.msra.mxu0 %v459
        %590 = vmatprep.subr.bf16.mxu0 0
        %591 = vmatpush1.bf16.msra.mxu0 %v456
        %592 = vmatprep.subr.bf16.mxu0 0
        %593 = vmatpush1.bf16.msra.mxu0 %v453
        %594 = vmatprep.subr.bf16.mxu0 0
        %595 = vmatpush1.bf16.msra.mxu0 %v450
        %596 = vmatprep.subr.bf16.mxu0 0
        %597 = vmatpush1.bf16.msra.mxu0 %v447
        %598 = vmatprep.subr.bf16.mxu0 0
        %599 = vmatpush2.bf16.msra.mxu0 %v492
        %600 = vmatprep.subr.bf16.mxu0 0
        %601 = vmatpush2.bf16.msra.mxu0 %v489
        %602 = vmatprep.subr.bf16.mxu0 0
        %603 = vmatpush2.bf16.msra.mxu0 %v486
        %604 = vmatprep.subr.bf16.mxu0 0
        %605 = vmatpush2.bf16.msra.mxu0 %v483
        %606 = vmatprep.subr.bf16.mxu0 0
        %607 = vmatpush2.bf16.msra.mxu0 %v480
        %608 = vmatprep.subr.bf16.mxu0 0
        %609 = vmatpush2.bf16.msra.mxu0 %v477
        %610 = vmatprep.subr.bf16.mxu0 0
        %611 = vmatpush2.bf16.msra.mxu0 %v474
        %612 = vmatprep.subr.bf16.mxu0 0
        %613 = vmatpush2.bf16.msra.mxu0 %v471
        %614 = vmatprep.mubr.bf16.mxu0 %v282
        %615 = vmatmul.mubr.bf16.gmra.mxu0 %v275
        %v616 = vpop.f32.mrf.mxu0
        %v617 = vadd.f32 0.0, %v616
        %v618 = vpop.f32.mrf.mxu0
        %v619 = vpop.f32.mrf.mxu0
        %v620 = vpop.f32.mrf.mxu0
        %621 = vdwg.mxu0
        %v625 = vcombine.low %v576, %v578
        %v627 = vunpack.c.l.s4 1983009808
        %v628 = vunpack.c.0.s8 %v627
        %v629 = vlaneseq
        %v630 = vshrl.u32 %v629, 7
        %v631 = vsub.s32 %v628, %v630
        %v632 = vrot.slane %v625, %v631
        %v634 = vunpack.c.l.s4 1983009808
        %v635 = vunpack.c.0.s8 %v634
        %v636 = vlaneseq
        %v637 = vshrl.u32 %v636, 7
        %v638 = vsub.s32 %v635, %v637
        %v639 = vrot.slane %v617, %v638
        %v640 = vcombine.low %v632, %v639
        %v642 = vadd.f32 %v195, %v640
        %vm643 = vcmask 1041408
        %vm644 = vcmask 1043458
        %vm645 = vmor %vm644, %vm643
        %vm646 = vcmask 5124
        %vm647 = vmor %vm646, %vm645
        %648 = vst.msk [vmem:[#allocation2] sm:$0x3f] %vm647, %v642
        %v649 = vld [vmem:[#allocation3] sm:$0x3]
        %v650 = vunpack.c.l.bf16 %v194
        %v653 = vunpack.c.l.s4 1983009808
        %v654 = vunpack.c.0.s8 %v653
        %v655 = vlaneseq
        %v656 = vshrl.u32 %v655, 7
        %v657 = vsub.s32 %v654, %v656
        %v658 = vrot.slane %v650, %v657
        %v659 = vcombine.high %v658, %v658
        %v662 = vsel %vm643, %v658, 0.0
        %v663 = vsel %vm643, %v659, 0.0
        %v664 = vadd.f32 %v662, %v663
        %665 = vadd.xlane.f32.xlu0 %v664
        %v666 = vpop.xlane.xlu0 %665
        %v667 = vadd.f32 %v649, %v666
        %vm668 = vcmask 1024
        %669 = vst.msk [vmem:[#allocation3] sm:$0x3] %vm668, %v667
        %p670 = scmp.eq.s32.totalorder %s15, 3
        // Predicated region
        $region37: #{tpu_custom_call.1} parent=31 // pred_check
          %p671 = pneg %p670
        $region38: #{tpu_custom_call.1} parent=31 // pred_check_branch
          %673 = sbr.rel (%p671) target = $region40
        $region39: #{tpu_custom_call.1} parent=31 // pred_region
          %v674 = vld [vmem:[#allocation3] sm:$0x3]
          %v675 = vmul.f32 %v674, 0.0009765625
          %v676 = vld [vmem:[#allocation2] sm:$0x3f]
          %v677 = vld [vmem:[%s2] sm:$0x7]
          %679 = vset.pattern.permute.xlu0 0
          %680 = vperm.xlu0 %679, %v675
          %v681 = vpop.permute.xlu0 %680
          %v684 = vlaneseq
          %v685 = vshrl.u32 %v684, 7
          %v686 = vsub.s32 0, %v685
          %v687 = vrot.slane %v677, %v686
          %v688 = vlaneseq
          %v689 = vshrl.u32 %v688, 7
          %v690 = vsub.s32 1, %v689
          %v691 = vrot.slane %v677, %v690
          %v692 = vlaneseq
          %v693 = vshrl.u32 %v692, 7
          %v694 = vsub.s32 2, %v693
          %v695 = vrot.slane %v677, %v694
          %v699 = vmul.f32 %v681, %v687
          %v700 = vmul.f32 %v681, %v691
          %v701 = vmul.f32 %v681, %v695
          %v705 = vcombine.low %v699, %v700
          %v707 = vunpack.c.l.s4 1983009808
          %v708 = vunpack.c.0.s8 %v707
          %v709 = vlaneseq
          %v710 = vshrl.u32 %v709, 7
          %v711 = vsub.s32 %v708, %v710
          %v712 = vrot.slane %v705, %v711
          %v714 = vunpack.c.l.s4 1983009808
          %v715 = vunpack.c.0.s8 %v714
          %v716 = vlaneseq
          %v717 = vshrl.u32 %v716, 7
          %v718 = vsub.s32 %v715, %v717
          %v719 = vrot.slane %v701, %v718
          %v720 = vcombine.low %v712, %v719
          %v722 = vsub.f32 %v676, %v720
          %v723 = vmul.f32 %v722, %v722
          %v726 = vunpack.c.l.s4 1983009808
          %v727 = vunpack.c.0.s8 %v726
          %v728 = vlaneseq
          %v729 = vshrl.u32 %v728, 7
          %v730 = vsub.s32 %v727, %v729
          %v731 = vrot.slane %v723, %v730
          %v732 = vcombine.high %v731, %v731
          %v735 = vsel %vm643, %v731, 0.0
          %v736 = vsel %vm643, %v732, 0.0
          %v737 = vadd.f32 %v735, %v736
          %738 = vadd.xlane.f32.xlu0 %v737
          %v739 = vpop.xlane.xlu0 %738
          %v740 = vmax.f32 %v739, 1e-16
          %v741 = vrsqrt.pop %v740
          %v743 = vrot.slane %v722, 4
          %v745 = vmul.f32 %v743, %v741
          %747 = vset.pattern.permute.xlu0 0
          %748 = vperm.xlu0 %747, %v745
          %v749 = vpop.permute.xlu0 %748
          %v752 = vunpack.c.l.s4 269488144
          %v753 = vunpack.c.0.s8 %v752
          %v754 = vlaneseq
          %v755 = vshrl.u32 %v754, 7
          %v756 = vsub.s32 %v753, %v755
          %v757 = vrot.slane %v749, %v756
          %758 = vst [vmem:[#allocation4] sm:$0x3] %v757
        $region40: #{tpu_custom_call.1} parent=31 // pred_fallthru
          _
        // Predicated region
        $region41: #{tpu_custom_call.1} parent=31 // pred_check
          %p759 = pneg %p101
        $region42: #{tpu_custom_call.1} parent=31 // pred_check_branch
          %761 = sbr.rel (%p759) target = $region44
        $region43: #{tpu_custom_call.1} parent=31 // pred_region
          %s763 = ssub.s32 32, 32
          %764 = vsyncadd [#allocation5], %s763
          %s766 = sshll.u32 [#allocation4], 4
          %s767 = int_to_ptr.vmem [resolvable:$true] %s766
          %769 = dma.vmem_to_hbm [thread:$0]  %s767, 32, %s3, [#allocation5]
        $region44: #{tpu_custom_call.1} parent=31 // pred_fallthru
          _
        // Predicated region
        $region45: #{tpu_custom_call.1} parent=31 // pred_check
          %p770 = pneg %p101
        $region46: #{tpu_custom_call.1} parent=31 // pred_check_branch
          %772 = sbr.rel (%p770) target = $region48
        $region47: #{tpu_custom_call.1} parent=31 // pred_region
          %773 = dma.done [#allocation5], 32
        $region48: #{tpu_custom_call.1} parent=31 // pred_fallthru
          _
      $region32: #{tpu_custom_call.1} parent=5 // pred_fallthru
        _
      %p774 = scmp.le.s32.totalorder 2, %s10
      // Predicated region
      $region49: #{tpu_custom_call.1} parent=5 // pred_check
        %p775 = pneg %p774
      $region50: #{tpu_custom_call.1} parent=5 // pred_check_branch
        %777 = sbr.rel (%p775) target = $region52
      $region51: #{tpu_custom_call.1} parent=5 // pred_region
        %s778 = ssub.s32 %s10, 2
      $region52: #{tpu_custom_call.1} parent=5 // pred_fallthru
        _
    $region6: #{tpu_custom_call.1} parent=1 // loop_footer
      %s14 = sadd.s32 1, %s10
    $region7: #{tpu_custom_call.1} parent=1 // loop_footer_branch
      %9 = sbr.rel target = $region3
    $region8: #{tpu_custom_call.1} parent=1 // loop_exit
      _
    %779 = vsyncpa [#allocation5], 1
    %s780 = scalar_lea.sflag [#allocation5], 1
    %781 = vsyncpa %s780, 1

</llo_original>
